<compile_context>
chip_gen: v7x
topology: tpu7x:2x2x1
jax: 0.10.0
libtpu: 0.0.40
codegen_flags: <defaults>
</compile_context>

<pallas_src>
import math
from functools import partial

import jax
import jax.numpy as jnp
from jax.experimental import pallas as pl
from jax.experimental.pallas import tpu as pltpu


def make_pos_embedding(emb_size: int, maxlen: int = 5000, dtype=jnp.float32):
    """Builds the (maxlen, emb_size) sinusoidal table exactly like the PyTorch __init__.

    Build it directly in the activation dtype so the kernel wrapper never has to cast
    the full table per call.
    """
    assert emb_size % 2 == 0, "emb_size must be even (same assumption as the PyTorch module)"
    den = jnp.exp(-jnp.arange(0, emb_size, 2, dtype=jnp.float32)
                  * math.log(10000.0) / emb_size)                    # [E/2]
    pos = jnp.arange(0, maxlen, dtype=jnp.float32)[:, None]          # [maxlen, 1]
    angles = pos * den[None, :]                                      # [maxlen, E/2]
    pe = jnp.zeros((maxlen, emb_size), dtype=jnp.float32)
    pe = pe.at[:, 0::2].set(jnp.sin(angles))
    pe = pe.at[:, 1::2].set(jnp.cos(angles))
    return pe.astype(dtype)


def _pos_add_kernel(x_ref, pe_ref, o_ref, *, batch_tile: int, emb: int):
    # x_ref : [ts, bt*E]  flattened (batch, emb) slab for this (seq, batch) tile
    # pe_ref: [ts, E]     positional rows for the same sequence tile
    # o_ref : [ts, bt*E]
    pe = pe_ref[...]
    # Static per-batch slice add: ref slices are zero-cost views, no [ts, bt*E]
    # broadcast temporary, and every store is a lane-aligned full-E slab.
    for b in range(batch_tile):
        sl = slice(b * emb, (b + 1) * emb)
        o_ref[:, sl] = (x_ref[:, sl] + pe).astype(o_ref.dtype)


def _round_up(x: int, m: int) -> int:
    return ((x + m - 1) // m) * m


def _sublane_multiple(dtype) -> int:
    # f32 -> 8 rows/vreg, bf16/f16 -> 16, int8/fp8 -> 32 (packed sublanes).
    return max(8, 32 // jnp.dtype(dtype).itemsize)


def _largest_divisor_at_most(n: int, cap: int) -> int:
    cap = max(1, min(n, cap))
    for d in range(cap, 0, -1):
        if n % d == 0:
            return d
    return 1


def positional_encoding(token_embedding: jax.Array, pos_embedding: jax.Array,
                        *, seq_tile: int | None = None,
                        batch_tile: int | None = None,
                        target_tile_bytes: int = 2 * 1024 * 1024,
                        donate_input: bool = False):
    """token_embedding: [S, B, E] (seq-first);  pos_embedding: [maxlen, E], maxlen >= S."""
    S, B, E = token_embedding.shape
    maxlen, E_pe = pos_embedding.shape
    assert E_pe == E, "pos_embedding emb_size mismatch"
    assert maxlen >= S, "sequence longer than positional table"
    dtype = token_embedding.dtype
    itemsize = jnp.dtype(dtype).itemsize
    sub = _sublane_multiple(dtype)

    # Table in activation dtype (no-op when constructed correctly with make_pos_embedding).
    pe = pos_embedding if pos_embedding.dtype == dtype else pos_embedding.astype(dtype)

    # Free trailing-dim merge -> lane-dense 2D slab (lane dim = B*E).
    x2d = token_embedding.reshape(S, B * E)

    # ---- Tile selection -------------------------------------------------------
    # Batch tile: bound the per-step lane width so the tile fits the budget even for
    # huge B*E rows (v7x), cap the in-kernel unroll, and keep batch boundaries exact.
    if batch_tile is not None:
        bt = batch_tile
    else:
        bt_budget = max(1, target_tile_bytes // (sub * E * itemsize))
        bt = _largest_divisor_at_most(B, min(bt_budget, 32))
    if E % 128 != 0:
        # Lane blocking requires bt*E to be a multiple of 128 (or the full lane dim).
        bt = B
    bt = max(1, min(bt, B))

    # Seq tile: fill the remaining budget, rounded to the dtype's sublane packing.
    row_bytes = bt * E * itemsize
    if seq_tile is not None:
        ts = seq_tile
    else:
        ts = max(1, target_tile_bytes // max(1, row_bytes))
    ts = max(sub, (ts // sub) * sub)
    ts = min(ts, _round_up(S, sub))

    grid = (pl.cdiv(S, ts), pl.cdiv(B, bt))

    # Real per-step footprint: double-buffered x in + out tiles, double-buffered pe rows.
    x_tile_bytes = ts * bt * E * itemsize
    pe_tile_bytes = ts * E * itemsize
    footprint = 2 * (2 * x_tile_bytes) + 2 * pe_tile_bytes
    vmem_limit = int(min(48 * 1024 * 1024, max(footprint + (2 << 20), 12 * 1024 * 1024)))

    # NOTE: the last seq block's pe DMA may touch rows up to round_up(S, ts); Pallas
    # clamps partial-block DMAs at the table edge and the corresponding output rows
    # (>= S) are masked on writeback, so maxlen >= S is sufficient.
    cost = pl.CostEstimate(
        flops=S * B * E,
        bytes_accessed=2 * S * B * E * itemsize + S * E * itemsize,
        transcendentals=0,
    )

    extra_kwargs = {}
    if donate_input:
        extra_kwargs["input_output_aliases"] = {0: 0}

    out2d = pl.pallas_call(
        partial(_pos_add_kernel, batch_tile=bt, emb=E),
        out_shape=jax.ShapeDtypeStruct((S, B * E), dtype),
        grid_spec=pltpu.PrefetchScalarGridSpec(
            num_scalar_prefetch=0,
            grid=grid,
            in_specs=[
                pl.BlockSpec((ts, bt * E), lambda i, j: (i, j)),   # x slab, tiled (seq, batch)
                pl.BlockSpec((ts, E), lambda i, j: (i, 0)),        # rows straight from full table
            ],
            out_specs=pl.BlockSpec((ts, bt * E), lambda i, j: (i, j)),
        ),
        compiler_params=pltpu.CompilerParams(
            dimension_semantics=("parallel", "parallel"),          # both axes independent
            vmem_limit_bytes=vmem_limit,
        ),
        cost_estimate=cost,
        **extra_kwargs,
    )(x2d, pe)

    return out2d.reshape(S, B, E)


if __name__ == "__main__":
    key = jax.random.PRNGKey(0)
    k1, k2, k3 = jax.random.split(key, 3)

    # Small shapes consistent with the module's seq-first forward: [S, B, E].
    B, E = 2, 128
    maxlen = 64  # small synthetic maxlen (>= S); PyTorch default is 5000
    pe_table = make_pos_embedding(E, maxlen=maxlen, dtype=jnp.float32)

    # Case 1: auto tile size (single block at this tiny shape).
    S1 = 16
    x1 = jax.random.normal(k1, (S1, B, E), dtype=jnp.float32)
    out1 = jax.block_until_ready(positional_encoding(x1, pe_table))
    ref1 = x1 + pe_table[:S1][:, None, :]
    assert out1.shape == (S1, B, E)
    assert jnp.allclose(out1, ref1, atol=1e-6), "mismatch vs reference (case 1)"

    # Case 2: multi-block pipeline over the sequence axis (grid = (4, 1)).
    S2 = 32
    x2 = jax.random.normal(k2, (S2, B, E), dtype=jnp.float32)
    out2 = jax.block_until_ready(positional_encoding(x2, pe_table, seq_tile=8))
    ref2 = x2 + pe_table[:S2][:, None, :]
    assert out2.shape == (S2, B, E)
    assert jnp.allclose(out2, ref2, atol=1e-6), "mismatch vs reference (case 2)"

    # Case 3: exercise the batch grid axis too (grid = (2, 2) via a tiny tile budget).
    S3, B3 = 16, 4
    x3 = jax.random.normal(k3, (S3, B3, E), dtype=jnp.float32)
    out3 = jax.block_until_ready(
        positional_encoding(x3, pe_table, target_tile_bytes=8 * 1024))
    ref3 = x3 + pe_table[:S3][:, None, :]
    assert out3.shape == (S3, B3, E)
    assert jnp.allclose(out3, ref3, atol=1e-6), "mismatch vs reference (case 3)"

    print("KERNEL_OK")
</pallas_src>

<mosaic_0001>
module attributes {stable_mosaic.version = 11 : i64} {
  func.func @_pos_add_kernel(%arg0: i32, %arg1: i32, %arg2: memref<16x256xf32, #tpu.memory_space<vmem>>, %arg3: memref<16x128xf32, #tpu.memory_space<vmem>>, %arg4: memref<16x256xf32, #tpu.memory_space<vmem>>) attributes {dimension_semantics = [#tpu.dimension_semantics<parallel>, #tpu.dimension_semantics<parallel>], iteration_bounds = array<i64: 1, 1>, scalar_prefetch = 0 : i64, scratch_operands = 0 : i64, tpu.core_type = #tpu.core_type<tc>, window_params = [{transform_indices = @transform_0, window_bounds = array<i64: 16, 256>}, {transform_indices = @transform_1, window_bounds = array<i64: 16, 128>}, {transform_indices = @transform_2, window_bounds = array<i64: 16, 256>}]} {
    %c0 = arith.constant 0 : index
    %c0_0 = arith.constant 0 : index
    %0 = vector.load %arg3[%c0, %c0_0] : memref<16x128xf32, #tpu.memory_space<vmem>>, vector<16x128xf32>
    %c0_1 = arith.constant 0 : index
    %c0_2 = arith.constant 0 : index
    %1 = vector.load %arg2[%c0_1, %c0_2] : memref<16x256xf32, #tpu.memory_space<vmem>>, vector<16x128xf32>
    %2 = arith.addf %1, %0 : vector<16x128xf32>
    %c0_3 = arith.constant 0 : index
    %c0_4 = arith.constant 0 : index
    %3 = vector.load %arg4[%c0_3, %c0_4] : memref<16x256xf32, #tpu.memory_space<vmem>>, vector<16x128xf32>
    tpu.vector_store %arg4[%c0_3, %c0_4], %2 {strides = array<i32>} : memref<16x256xf32, #tpu.memory_space<vmem>>, vector<16x128xf32>,
    %c0_5 = arith.constant 0 : index
    %c128 = arith.constant 128 : index
    %4 = vector.load %arg2[%c0_5, %c128] : memref<16x256xf32, #tpu.memory_space<vmem>>, vector<16x128xf32>
    %5 = arith.addf %4, %0 : vector<16x128xf32>
    %c0_6 = arith.constant 0 : index
    %c128_7 = arith.constant 128 : index
    %6 = vector.load %arg4[%c0_6, %c128_7] : memref<16x256xf32, #tpu.memory_space<vmem>>, vector<16x128xf32>
    tpu.vector_store %arg4[%c0_6, %c128_7], %5 {strides = array<i32>} : memref<16x256xf32, #tpu.memory_space<vmem>>, vector<16x128xf32>,
    return
  }
  func.func @transform_0(%arg0: i32, %arg1: i32) -> (i32, i32) {
    %c0_i32 = arith.constant 0 : i32
    return %arg0, %arg1 : i32, i32
  }
  func.func @transform_1(%arg0: i32, %arg1: i32) -> (i32, i32) {
    %c0_i32 = arith.constant 0 : i32
    %c0_i32_0 = arith.constant 0 : i32
    return %arg0, %c0_i32 : i32, i32
  }
  func.func @transform_2(%arg0: i32, %arg1: i32) -> (i32, i32) {
    %c0_i32 = arith.constant 0 : i32
    return %arg0, %arg1 : i32, i32
  }
}

</mosaic_0001>

<llo_original>
// kernel: tpu_custom_call.1
$region0: #{tpu_custom_call.1}
  #allocation0 [shape = 'u32[]', space=smem, size = 0x4, offset = 0x4, fixed_abs, tag = 'smem constant byte address 0x4 - core index']
  #allocation1 [shape = 'u32[144,128]{1,0:T(1,128)}', space=vmem, size = 0x12000, scoped, tag = 'internal scratch']
  %s0 = inlined_call_operand.hbm [shape: f32[16,256], index: 0, kind: input, shape index: {}]
  %s1 = inlined_call_operand.hbm [shape: f32[64,128], index: 1, kind: input, shape index: {}]
  %s2 = inlined_call_operand.hbm [shape: f32[16,256], index: 2, kind: output, shape index: {}]
  %s3 = sld [smem:[#allocation0]]
  $region26: #{tpu_custom_call.1} parent=0
    _
  %s5 = ssub.s32 1, %s3
  %s6 = scalar_select 0, %s5, %s3
  $region1: #{tpu_custom_call.1} parent=0
    #allocation2 [shape = 'u8[16384]{0}', space=vmem, size = 0x4000, scoped, tag = 'input window, operand 0, single buffered']
    #allocation3 [shape = 's32[1]{0}', space=sflag, size = 0x4, scoped, tag = 'scoped memory for tpu_custom_call.1']
    #allocation4 [shape = 's32[1]{0}', space=sflag, size = 0x4, scoped, tag = 'scoped memory for tpu_custom_call.1']
    #allocation5 [shape = 'u8[8192]{0}', space=vmem, size = 0x2000, scoped, tag = 'input window, operand 1, single buffered']
    #allocation6 [shape = 's32[1]{0}', space=sflag, size = 0x4, scoped, tag = 'scoped memory for tpu_custom_call.1']
    #allocation7 [shape = 'u8[16384]{0}', space=vmem, size = 0x4000, scoped, tag = 'output window, operand 0, single buffered']
    %7 = vsyncpa [#allocation3], 0
    %8 = vsyncpa [#allocation6], 0
    %9 = vsyncpa [#allocation4], 0
    // Predicated region
    $region2: #{tpu_custom_call.1} parent=1 // pred_check
      _
    $region3: #{tpu_custom_call.1} parent=1 // pred_check_branch
      %11 = sbr.rel (0) target = $region5
    $region4: #{tpu_custom_call.1} parent=1 // pred_region
      %s13 = ssub.s32 512, 512
      %14 = vsyncadd [#allocation3], %s13
      %s15 = sshll.u32 [#allocation2], 4
      %s16 = int_to_ptr.vmem [resolvable:$true] %s15
      %21 = dma.hbm_to_vmem [thread:$0]  %s0, 512, %s16, [#allocation3], 256, 256, 16
    $region5: #{tpu_custom_call.1} parent=1 // pred_fallthru
      _
    // Predicated region
    $region6: #{tpu_custom_call.1} parent=1 // pred_check
      _
    $region7: #{tpu_custom_call.1} parent=1 // pred_check_branch
      %23 = sbr.rel (0) target = $region9
    $region8: #{tpu_custom_call.1} parent=1 // pred_region
      %s25 = ssub.s32 256, 256
      %26 = vsyncadd [#allocation6], %s25
      %s27 = sshll.u32 [#allocation5], 4
      %s28 = int_to_ptr.vmem [resolvable:$true] %s27
      %33 = dma.hbm_to_vmem [thread:$0]  %s1, 256, %s28, [#allocation6], 128, 128, 8
    $region9: #{tpu_custom_call.1} parent=1 // pred_fallthru
      _
    // Predicated region
    $region10: #{tpu_custom_call.1} parent=1 // pred_check
      _
    $region11: #{tpu_custom_call.1} parent=1 // pred_check_branch
      %35 = sbr.rel (0) target = $region13
    $region12: #{tpu_custom_call.1} parent=1 // pred_region
      %36 = dma.done [#allocation3], 512
    $region13: #{tpu_custom_call.1} parent=1 // pred_fallthru
      _
    // Predicated region
    $region14: #{tpu_custom_call.1} parent=1 // pred_check
      _
    $region15: #{tpu_custom_call.1} parent=1 // pred_check_branch
      %38 = sbr.rel (0) target = $region17
    $region16: #{tpu_custom_call.1} parent=1 // pred_region
      %39 = dma.done [#allocation6], 256
    $region17: #{tpu_custom_call.1} parent=1 // pred_fallthru
      _
    %v40 = vld [vmem:[#allocation5] sm:$0xff]
    %v41 = vld [vmem:[#allocation5 + $0x8] sm:$0xff]
    %v42 = vld [vmem:[#allocation2] sm:$0xff]
    %v43 = vld [vmem:[#allocation2 + $0x10] sm:$0xff]
    %v44 = vadd.f32 %v42, %v40
    %v45 = vadd.f32 %v43, %v41
    %46 = vst [vmem:[#allocation7] sm:$0xff] %v44
    %47 = vst [vmem:[#allocation7 + $0x10] sm:$0xff] %v45
    %v48 = vld [vmem:[#allocation2 + $0x8] sm:$0xff]
    %v49 = vld [vmem:[#allocation2 + $0x18] sm:$0xff]
    %v50 = vadd.f32 %v48, %v40
    %v51 = vadd.f32 %v49, %v41
    %52 = vst [vmem:[#allocation7 + $0x8] sm:$0xff] %v50
    %53 = vst [vmem:[#allocation7 + $0x18] sm:$0xff] %v51
    // Predicated region
    $region18: #{tpu_custom_call.1} parent=1 // pred_check
      _
    $region19: #{tpu_custom_call.1} parent=1 // pred_check_branch
      %55 = sbr.rel (0) target = $region21
    $region20: #{tpu_custom_call.1} parent=1 // pred_region
      %s57 = ssub.s32 512, 512
      %58 = vsyncadd [#allocation4], %s57
      %s59 = sshll.u32 [#allocation7], 4
      %s60 = int_to_ptr.vmem [resolvable:$true] %s59
      %65 = dma.vmem_to_hbm [thread:$0]  %s60, 512, %s2, [#allocation4], 256, 256, 16
    $region21: #{tpu_custom_call.1} parent=1 // pred_fallthru
      _
    // Predicated region
    $region22: #{tpu_custom_call.1} parent=1 // pred_check
      _
    $region23: #{tpu_custom_call.1} parent=1 // pred_check_branch
      %67 = sbr.rel (0) target = $region25
    $region24: #{tpu_custom_call.1} parent=1 // pred_region
      %68 = dma.done [#allocation4], 512
    $region25: #{tpu_custom_call.1} parent=1 // pred_fallthru
      _
    %69 = vsyncpa [#allocation3], 1
    %70 = vsyncpa [#allocation6], 1
    %71 = vsyncpa [#allocation4], 1

</llo_original>
